<compile_context>
chip_gen: v7x
topology: tpu7x:2x2x1
jax: 0.10.0
libtpu: 0.0.40
codegen_flags: <defaults>
</compile_context>

<pallas_src>
import functools

import jax
import jax.numpy as jnp
import numpy as np
from jax.experimental import pallas as pl
from jax.experimental.pallas import tpu as pltpu


def _pick_batch_tile(B, cap):
    """Largest divisor of B that is <= cap while keeping >= 2 grid steps
    (so v7x's two TensorCores both get work when B >= 2)."""
    best = 1
    for d in range(1, max(1, min(B, cap)) + 1):
        if B % d == 0 and (B < 2 or B // d >= 2):
            best = d
    return best


# ----------------------------------------------------------------------------
# Kernel 1: fused global-avg-pool + bf16 cast + zero-pad of x.
#   x crosses HBM exactly once; outputs feed both the attention branch
#   (pooled) and the conv kernel (x_flat).
# ----------------------------------------------------------------------------
def pool_pad_kernel(x_ref, pooled_ref, xflat_ref, *, C, HW, inv_hw):
    # x_ref:      (TB, C, HW)      f32
    # pooled_ref: (TB, C, 1)       f32   global average pool
    # xflat_ref:  (TB, Cpad, HWP)  bf16  zero-padded, lane-dense spatial axis
    xb = x_ref[...]                                        # single load of the block
    pooled_ref[...] = jnp.sum(xb, axis=2, keepdims=True) * inv_hw
    xflat_ref[...] = jnp.zeros_like(xflat_ref)             # zero channel/spatial pad
    xflat_ref[:, :C, :HW] = xb.astype(xflat_ref.dtype)


# ----------------------------------------------------------------------------
# Kernel 2: dynamic conv as accumulating per-dy im2col matmuls.
#   patch[(dx,c), p] = x[c, p + dy*W + dx]  (one KW*Cpad slab per dy, double-
#   buffered so the next slab's copies overlap the current dy's MXU dot)
#   out[o, p] = bias[o] + sum_dy wagg[o, dy-slab] @ patch_dy
# Output is kept in padded flat H*W coordinates (lane-dense); the wrapper
# slices the valid (HO, WO) region, pad/wrapped columns are never consumed.
# ----------------------------------------------------------------------------
def dyn_conv_kernel(wagg_ref, bagg_ref, x_ref, o_ref, patch_ref, *, Cpad, KH, KW, W, HW):
    # wagg_ref:  (TB, O, KH*KW*Cpad) bf16  columns ordered (dy, dx, c-padded)
    # bagg_ref:  (TB, O, 1)          f32
    # x_ref:     (TB, Cpad, HWP)     bf16  flat spatial on lanes, zero-padded right
    # o_ref:     (TB, O, HW)
    # patch_ref: VMEM (2, KW*Cpad, HW) bf16  double-buffered per-dy im2col slab
    TB, O, _ = o_ref.shape
    slab = KW * Cpad
    for b in range(TB):                                    # unrolled at trace time
        acc = jnp.broadcast_to(bagg_ref[b], (O, HW))       # f32; bias folded into init
        for dy in range(KH):
            slot = (b * KH + dy) % 2                       # alternate slabs so copies of
            for dx in range(KW):                           # dy+1 overlap the dot of dy
                off = dy * W + dx
                patch_ref[slot, dx * Cpad:(dx + 1) * Cpad, :] = x_ref[b, :, off:off + HW]
            acc = acc + jnp.dot(wagg_ref[b, :, dy * slab:(dy + 1) * slab],
                                patch_ref[slot],
                                preferred_element_type=jnp.float32)
        o_ref[b] = acc.astype(o_ref.dtype)


# ----------------------------------------------------------------------------
# Wrapper
# ----------------------------------------------------------------------------
def dynamic_conv2d_forward(x, params, *, kernel_size, K, temperature):
    B, C, H, W = x.shape
    O = params["weight"].shape[1]
    KH = KW = kernel_size
    HO, WO = H - KH + 1, W - KW + 1                 # padding=0, stride=1, dilation=1
    HW = H * W

    # sublane-aligned channel pad (bf16 packs 16 rows per vreg) -> full-tile
    # patch-row stores; the padded weight columns are zero so math is unchanged.
    Cpad = ((C + 15) // 16) * 16
    # lane pad so every (dy,dx)-shifted flat window is a contiguous slice
    max_off = (KH - 1) * W + (KW - 1)
    HWP = ((HW + max_off + 127) // 128) * 128
    CKpad = KH * KW * Cpad

    # ---- Kernel 1: pooled + padded bf16 x (single HBM read of x) ----
    per_sample_bytes = C * HW * 4 + Cpad * HWP * 2 + C * 4
    cap_a = max(1, (8 << 20) // max(1, 2 * per_sample_bytes))   # ~8 MiB/block budget
    TB_a = _pick_batch_tile(B, min(8, cap_a))
    pooled3, x_flat = pl.pallas_call(
        functools.partial(pool_pad_kernel, C=C, HW=HW, inv_hw=1.0 / HW),
        out_shape=(jax.ShapeDtypeStruct((B, C, 1), jnp.float32),
                   jax.ShapeDtypeStruct((B, Cpad, HWP), jnp.bfloat16)),
        grid=(B // TB_a,),
        in_specs=[pl.BlockSpec((TB_a, C, HW), lambda i: (i, 0, 0))],
        out_specs=[pl.BlockSpec((TB_a, C, 1), lambda i: (i, 0, 0)),
                   pl.BlockSpec((TB_a, Cpad, HWP), lambda i: (i, 0, 0))],
        compiler_params=pltpu.CompilerParams(
            dimension_semantics=("parallel",),
            vmem_limit_bytes=32 * 1024 * 1024),
    )(x.reshape(B, C, HW))
    pooled = pooled3.reshape(B, C)

    # ---- attention MLP + softmax: tiny (B,C)/(B,K) math, plain XLA f32 ----
    h = jax.nn.relu(pooled @ params["fc1_w"].T)
    logits = h @ params["fc2_w"].T + params["fc2_b"]
    attn = jax.nn.softmax(logits / float(temperature), axis=1)

    # ---- hoisted weight/bias aggregation (one small XLA matmul, f32) ----
    # expert weights reordered to (o, dy, dx, c) and channel-padded with zeros
    # so columns line up with the per-dy im2col slabs built in the kernel.
    w_perm = params["weight"].transpose(0, 1, 3, 4, 2)            # (K, O, KH, KW, C)
    w_perm = jnp.pad(w_perm, ((0, 0), (0, 0), (0, 0), (0, 0), (0, Cpad - C)))
    wagg = (attn @ w_perm.reshape(K, O * CKpad)).reshape(B, O, CKpad)
    wagg = wagg.astype(jnp.bfloat16)                              # MXU input
    bagg = (attn @ params["bias"]).reshape(B, O, 1)               # f32

    # ---- Kernel 2: dynamic conv, TB_c samples per grid step ----
    conv_sample_bytes = (O * CKpad * 2 + O * 4 + Cpad * HWP * 2
                         + O * HW * x.dtype.itemsize)
    cap_c = max(1, (8 << 20) // max(1, 2 * conv_sample_bytes))
    TB_c = _pick_batch_tile(B, min(8, cap_c))
    # TODO(synk): for realistic O / HW, add 'parallel' grid axes tiling O and the
    # spatial axis (with a max_off-column halo on x) and re-derive tile sizes from
    # the per-generation VMEM budget (64 MiB on v7x vs 128 MiB on v5e/v6e).
    out_full = pl.pallas_call(
        functools.partial(dyn_conv_kernel, Cpad=Cpad, KH=KH, KW=KW, W=W, HW=HW),
        out_shape=jax.ShapeDtypeStruct((B, O, HW), x.dtype),
        grid=(B // TB_c,),
        in_specs=[
            pl.BlockSpec((TB_c, O, CKpad), lambda b: (b, 0, 0)),   # wagg tile
            pl.BlockSpec((TB_c, O, 1), lambda b: (b, 0, 0)),       # bagg tile
            pl.BlockSpec((TB_c, Cpad, HWP), lambda b: (b, 0, 0)),  # padded x tile
        ],
        out_specs=pl.BlockSpec((TB_c, O, HW), lambda b: (b, 0, 0)),
        scratch_shapes=[pltpu.VMEM((2, KW * Cpad, HW), jnp.bfloat16)],
        compiler_params=pltpu.CompilerParams(
            dimension_semantics=("parallel",),
            # keep <= 32 MiB so the same tiling fits v7x's 64 MiB VMEM with
            # headroom; raise toward 96-112 MiB on v6e once tiles grow.
            vmem_limit_bytes=32 * 1024 * 1024),
    )(wagg, bagg, x_flat)

    # Valid (HO, WO) region of the lane-dense padded output.  Columns with
    # x >= WO or rows with y >= HO hold wrapped-window garbage by design and
    # MUST never be consumed; if the downstream op can take the padded (O, HW)
    # layout this slice (an extra output HBM round trip) can be skipped.
    out = out_full.reshape(B, O, H, W)[:, :, :HO, :WO]
    return out, attn


# ----------------------------------------------------------------------------
# Pure-JAX f32 reference for verification
# ----------------------------------------------------------------------------
def reference(x, params, *, kernel_size, K, temperature):
    B, C, H, W = x.shape
    O = params["weight"].shape[1]
    pooled = jnp.mean(x, axis=(2, 3))
    h = jax.nn.relu(pooled @ params["fc1_w"].T)
    logits = h @ params["fc2_w"].T + params["fc2_b"]
    attn = jax.nn.softmax(logits / float(temperature), axis=1)
    wagg = (attn @ params["weight"].reshape(K, -1)).reshape(B, O, C, kernel_size, kernel_size)
    bagg = attn @ params["bias"]
    outs = []
    for b in range(B):
        o = jax.lax.conv_general_dilated(
            x[b:b + 1], wagg[b], (1, 1), "VALID",
            dimension_numbers=("NCHW", "OIHW", "NCHW"))
        outs.append(o[0] + bagg[b][:, None, None])
    return jnp.stack(outs), attn


if __name__ == "__main__":
    # module config
    B, C, H, W = 2, 4, 16, 16
    O, kernel_size = 8, 3
    ratio, K, temperature = 0.25, 4, 34              # temperature % 3 == 1
    hidden = int(C * ratio) + 1                      # C != 3 branch

    key = jax.random.PRNGKey(0)
    k0, k1, k2, k3 = jax.random.split(key, 4)

    params = {
        # attention2d: fc1 (hidden, C) no bias; fc2 (K, hidden) + bias (init 0)
        "fc1_w": jax.random.normal(k1, (hidden, C), jnp.float32) * 0.5,
        "fc2_w": jax.random.normal(k2, (K, hidden), jnp.float32) * 0.5,
        "fc2_b": jnp.zeros((K,), jnp.float32),
        # K expert conv kernels (kaiming-normal-like) and per-expert bias (init 0)
        "weight": jax.random.normal(k3, (K, O, C, kernel_size, kernel_size), jnp.float32)
                  * (2.0 / (C * kernel_size * kernel_size)) ** 0.5,
        "bias": jnp.zeros((K, O), jnp.float32),
    }

    x = jax.random.normal(k0, (B, C, H, W), jnp.float32)

    out, attn = dynamic_conv2d_forward(x, params, kernel_size=kernel_size, K=K,
                                       temperature=temperature)
    out = jax.block_until_ready(out)

    ref_out, ref_attn = reference(x, params, kernel_size=kernel_size, K=K,
                                  temperature=temperature)

    # attention path is all-f32 -> tight check
    np.testing.assert_allclose(np.asarray(attn), np.asarray(ref_attn), rtol=1e-4, atol=1e-4)
    # conv matmul uses bf16 inputs (f32 accumulation) -> bf16-quantization tolerance
    np.testing.assert_allclose(np.asarray(out), np.asarray(ref_out), rtol=3e-2, atol=3e-2)

    print("KERNEL_OK")
</pallas_src>

<mosaic_0001>
module attributes {stable_mosaic.version = 11 : i64} {
  func.func @pool_pad_kernel(%arg0: i32, %arg1: memref<1x4x256xf32, #tpu.memory_space<vmem>>, %arg2: memref<1x4x1xf32, #tpu.memory_space<vmem>>, %arg3: memref<1x16x384xbf16, #tpu.memory_space<vmem>>) attributes {dimension_semantics = [#tpu.dimension_semantics<parallel>], iteration_bounds = array<i64: 2>, scalar_prefetch = 0 : i64, scratch_operands = 0 : i64, tpu.core_type = #tpu.core_type<tc>, window_params = [{transform_indices = @transform_0, window_bounds = array<i64: 1, 4, 256>}, {transform_indices = @transform_1, window_bounds = array<i64: 1, 4, 1>}, {transform_indices = @transform_2, window_bounds = array<i64: 1, 16, 384>}]} {
    %c0 = arith.constant 0 : index
    %c0_0 = arith.constant 0 : index
    %c0_1 = arith.constant 0 : index
    %0 = vector.load %arg1[%c0, %c0_0, %c0_1] : memref<1x4x256xf32, #tpu.memory_space<vmem>>, vector<1x4x256xf32>
    %cst = arith.constant dense<0.000000e+00> : vector<1x4xf32>
    %1 = vector.multi_reduction <add>, %0, %cst [2] : vector<1x4x256xf32> to vector<1x4xf32>
    %2 = vector.shape_cast %1 : vector<1x4xf32> to vector<1x4x1xf32>
    %cst_2 = arith.constant 3.906250e-03 : f32
    %3 = vector.broadcast %cst_2 : f32 to vector<1x4x1xf32>
    %4 = arith.mulf %2, %3 : vector<1x4x1xf32>
    %c0_3 = arith.constant 0 : index
    %c0_4 = arith.constant 0 : index
    %c0_5 = arith.constant 0 : index
    %5 = vector.load %arg2[%c0_3, %c0_4, %c0_5] : memref<1x4x1xf32, #tpu.memory_space<vmem>>, vector<1x4x1xf32>
    tpu.vector_store %arg2[%c0_3, %c0_4, %c0_5], %4 {strides = array<i32>} : memref<1x4x1xf32, #tpu.memory_space<vmem>>, vector<1x4x1xf32>,
    %cst_6 = arith.constant 0.000000e+00 : bf16
    %6 = vector.broadcast %cst_6 : bf16 to vector<1x16x384xbf16>
    %c0_7 = arith.constant 0 : index
    %c0_8 = arith.constant 0 : index
    %c0_9 = arith.constant 0 : index
    %7 = vector.load %arg3[%c0_7, %c0_8, %c0_9] : memref<1x16x384xbf16, #tpu.memory_space<vmem>>, vector<1x16x384xbf16>
    tpu.vector_store %arg3[%c0_7, %c0_8, %c0_9], %6 {strides = array<i32>} : memref<1x16x384xbf16, #tpu.memory_space<vmem>>, vector<1x16x384xbf16>,
    %8 = arith.truncf %0 : vector<1x4x256xf32> to vector<1x4x256xbf16>
    %c0_10 = arith.constant 0 : index
    %c0_11 = arith.constant 0 : index
    %c0_12 = arith.constant 0 : index
    %9 = vector.load %arg3[%c0_10, %c0_11, %c0_12] : memref<1x16x384xbf16, #tpu.memory_space<vmem>>, vector<1x4x256xbf16>
    tpu.vector_store %arg3[%c0_10, %c0_11, %c0_12], %8 {strides = array<i32>} : memref<1x16x384xbf16, #tpu.memory_space<vmem>>, vector<1x4x256xbf16>,
    return
  }
  func.func @transform_0(%arg0: i32) -> (i32, i32, i32) {
    %c0_i32 = arith.constant 0 : i32
    %c0_i32_0 = arith.constant 0 : i32
    %c0_i32_1 = arith.constant 0 : i32
    return %arg0, %c0_i32, %c0_i32_0 : i32, i32, i32
  }
  func.func @transform_1(%arg0: i32) -> (i32, i32, i32) {
    %c0_i32 = arith.constant 0 : i32
    %c0_i32_0 = arith.constant 0 : i32
    %c0_i32_1 = arith.constant 0 : i32
    return %arg0, %c0_i32, %c0_i32_0 : i32, i32, i32
  }
  func.func @transform_2(%arg0: i32) -> (i32, i32, i32) {
    %c0_i32 = arith.constant 0 : i32
    %c0_i32_0 = arith.constant 0 : i32
    %c0_i32_1 = arith.constant 0 : i32
    return %arg0, %c0_i32, %c0_i32_0 : i32, i32, i32
  }
}

</mosaic_0001>

<llo_original>
// kernel: tpu_custom_call.1
$region0: #{tpu_custom_call.1}
  #allocation0 [shape = 'u32[]', space=smem, size = 0x4, offset = 0x4, fixed_abs, tag = 'smem constant byte address 0x4 - core index']
  #allocation1 [shape = 'u32[144,128]{1,0:T(1,128)}', space=vmem, size = 0x12000, scoped, tag = 'internal scratch']
  %s0 = inlined_call_operand.hbm [shape: f32[2,4,256], index: 0, kind: input, shape index: {}]
  %s1 = inlined_call_operand.vmem [shape: f32[2,4,1], index: 1, kind: output, shape index: {0}]
  %s2 = inlined_call_operand.hbm [shape: bf16[2,16,384], index: 2, kind: output, shape index: {1}]
  %3 = xla_tuple %s1, %s2
  %s4 = sld [smem:[#allocation0]]
  $region49: #{tpu_custom_call.1} parent=0
    _
  %s6 = ssub.s32 1, %s4
  %s7 = scalar_select 0, %s6, %s4
  $region1: #{tpu_custom_call.1} parent=0
    #allocation2 [shape = 'u8[8192]{0}', space=vmem, size = 0x2000, scoped, tag = 'input window, operand 0']
    #allocation3 [shape = 's32[2]{0}', space=sflag, size = 0x8, scoped, tag = 'scoped memory for tpu_custom_call.1']
    #allocation4 [shape = 's32[2]{0}', space=sflag, size = 0x8, scoped, tag = 'scoped memory for tpu_custom_call.1']
    #allocation5 [shape = 'u8[24576]{0}', space=vmem, size = 0x6000, scoped, tag = 'output window, operand 1']
    %8 = vsyncpa [#allocation3], 0
    %s9 = scalar_lea.sflag [#allocation3], 1
    %10 = vsyncpa %s9, 0
    %11 = vsyncpa [#allocation4], 0
    %s12 = scalar_lea.sflag [#allocation4], 1
    %13 = vsyncpa %s12, 0
    loop: start=0, step=1, limit=4
    $region2: #{tpu_custom_call.1} parent=1 // loop_pre_header
      _
    $region3: #{tpu_custom_call.1} parent=1 // loop_header
      %s15 = sphi 0, %s19
      %p16 = scmp.ge.s32.totalorder %s15, 4
      %s25 = sphi 0, %s27
      %s28 = sphi 0, %s25
      %s29 = sphi 0, %s28
      %s45 = sphi 0, %s29
      %s51 = sphi 0, %s53
      %s54 = sphi 0, %s51
      %s55 = sphi 0, %s54
      %s71 = sphi 0, %s55
      %s77 = sphi 0, %s79
      %s80 = sphi 0, %s77
      %s81 = sphi 0, %s80
      %s97 = sphi 0, %s81
    $region4: #{tpu_custom_call.1} parent=1 // loop_header_branch
      %18 = sbr.rel (%p16) target = $region8
    $region5: #{tpu_custom_call.1} parent=1 // loop_body
      %s20 = ssub.s32 %s15, 1
      %s21 = ssub.s32 %s15, 2
      %s22 = sadd.s32 %s15, 1
      %s23 = ssub.s32 %s15, %s22
      %p24 = scmp.eq.s32.totalorder %s23, 0
      %s26 = sadd.s32 %s25, 1
      %s27 = scalar_select %p24, %s25, %s26
      %p30 = pneg %p24
      %p31 = scmp.eq.s32.totalorder %s15, 1
      %p32 = por %p30, %p31
      %p33 = scmp.ne.s32.totalorder %s25, %s28
      %p34 = scmp.eq.s32.totalorder %s15, 0
      %p35 = por %p33, %p34
      %p36 = scmp.ne.s32.totalorder %s25, %s28
      %p37 = scmp.eq.s32.totalorder %s20, 1
      %p38 = por %p36, %p37
      %p39 = scmp.ne.s32.totalorder %s28, %s29
      %p40 = scmp.eq.s32.totalorder %s20, 0
      %p41 = por %p39, %p40
      %p42 = scmp.ne.s32.totalorder %s28, %s29
      %p43 = scmp.eq.s32.totalorder %s21, 1
      %p44 = por %p42, %p43
      %p46 = scmp.ne.s32.totalorder %s29, %s45
      %p47 = scmp.eq.s32.totalorder %s21, 0
      %p48 = por %p46, %p47
      %s49 = ssub.s32 %s15, %s22
      %p50 = scmp.eq.s32.totalorder %s49, 0
      %s52 = sadd.s32 %s51, 1
      %s53 = scalar_select %p50, %s51, %s52
      %p56 = pneg %p50
      %p57 = scmp.eq.s32.totalorder %s15, 1
      %p58 = por %p56, %p57
      %p59 = scmp.ne.s32.totalorder %s51, %s54
      %p60 = scmp.eq.s32.totalorder %s15, 0
      %p61 = por %p59, %p60
      %p62 = scmp.ne.s32.totalorder %s51, %s54
      %p63 = scmp.eq.s32.totalorder %s20, 1
      %p64 = por %p62, %p63
      %p65 = scmp.ne.s32.totalorder %s54, %s55
      %p66 = scmp.eq.s32.totalorder %s20, 0
      %p67 = por %p65, %p66
      %p68 = scmp.ne.s32.totalorder %s54, %s55
      %p69 = scmp.eq.s32.totalorder %s21, 1
      %p70 = por %p68, %p69
      %p72 = scmp.ne.s32.totalorder %s55, %s71
      %p73 = scmp.eq.s32.totalorder %s21, 0
      %p74 = por %p72, %p73
      %s75 = ssub.s32 %s15, %s22
      %p76 = scmp.eq.s32.totalorder %s75, 0
      %s78 = sadd.s32 %s77, 1
      %s79 = scalar_select %p76, %s77, %s78
      %p82 = pneg %p76
      %p83 = scmp.eq.s32.totalorder %s15, 1
      %p84 = por %p82, %p83
      %p85 = scmp.ne.s32.totalorder %s77, %s80
      %p86 = scmp.eq.s32.totalorder %s15, 0
      %p87 = por %p85, %p86
      %p88 = scmp.ne.s32.totalorder %s77, %s80
      %p89 = scmp.eq.s32.totalorder %s20, 1
      %p90 = por %p88, %p89
      %p91 = scmp.ne.s32.totalorder %s80, %s81
      %p92 = scmp.eq.s32.totalorder %s20, 0
      %p93 = por %p91, %p92
      %p94 = scmp.ne.s32.totalorder %s80, %s81
      %p95 = scmp.eq.s32.totalorder %s21, 1
      %p96 = por %p94, %p95
      %p98 = scmp.ne.s32.totalorder %s81, %s97
      %p99 = scmp.eq.s32.totalorder %s21, 0
      %p100 = por %p98, %p99
      %p101 = scmp.le.s32.totalorder 1, %s15
      %p102 = scmp.lt.s32.totalorder %s15, 3
      %p103 = pnand %p101, %p102
      %p104 = pneg %p103
      // Predicated region
      $region9: #{tpu_custom_call.1} parent=5 // pred_check
        _
      $region10: #{tpu_custom_call.1} parent=5 // pred_check_branch
        %106 = sbr.rel (%p103) target = $region12
      $region11: #{tpu_custom_call.1} parent=5 // pred_region
        %s107 = ssub.s32 %s15, 1
      $region12: #{tpu_custom_call.1} parent=5 // pred_fallthru
        _
      %p108 = scmp.lt.s32.totalorder %s15, 2
      // Predicated region
      $region13: #{tpu_custom_call.1} parent=5 // pred_check
        %p109 = pneg %p108
      $region14: #{tpu_custom_call.1} parent=5 // pred_check_branch
        %111 = sbr.rel (%p109) target = $region16
      $region15: #{tpu_custom_call.1} parent=5 // pred_region
        // Predicated region
        $region17: #{tpu_custom_call.1} parent=15 // pred_check
          %p112 = pneg %p35
        $region18: #{tpu_custom_call.1} parent=15 // pred_check_branch
          %114 = sbr.rel (%p112) target = $region20
        $region19: #{tpu_custom_call.1} parent=15 // pred_region
          %s115 = sand.u32 %s25, 1
          %s116 = scalar_lea.sflag [#allocation3], %s115
          %s117 = sand.u32 %s25, 1
          %s118 = smul.addr %s117, 8
          %s119 = scalar_lea.vmem [#allocation2], %s118
          %s121 = ssub.s32 128, 128
          %122 = vsyncadd %s116, %s121
          %s123 = smul.addr %s15, 2
          %s124 = smul.addr %s123, 64
          %s125 = scalar_lea.hbm %s0, %s124
          %s127 = sshll.u32 %s119, 4
          %s128 = int_to_ptr.vmem [resolvable:$true] %s127
          %130 = dma.hbm_to_vmem [thread:$0]  %s125, 128, %s128, %s116
        $region20: #{tpu_custom_call.1} parent=15 // pred_fallthru
          _
      $region16: #{tpu_custom_call.1} parent=5 // pred_fallthru
        _
      %p131 = scmp.le.s32.totalorder 1, %s15
      %p132 = scmp.lt.s32.totalorder %s15, 3
      %p133 = pnand %p131, %p132
      %p134 = pneg %p133
      // Predicated region
      $region21: #{tpu_custom_call.1} parent=5 // pred_check
        _
      $region22: #{tpu_custom_call.1} parent=5 // pred_check_branch
        %136 = sbr.rel (%p133) target = $region24
      $region23: #{tpu_custom_call.1} parent=5 // pred_region
        %s137 = ssub.s32 %s15, 1
        %s138 = sand.u32 %s28, 1
        %s139 = scalar_lea.sflag [#allocation3], %s138
        %s140 = sand.u32 %s28, 1
        %s141 = smul.addr %s140, 8
        %s142 = scalar_lea.vmem [#allocation2], %s141
        // Predicated region
        $region25: #{tpu_custom_call.1} parent=23 // pred_check
          %p143 = pneg %p41
        $region26: #{tpu_custom_call.1} parent=23 // pred_check_branch
          %145 = sbr.rel (%p143) target = $region28
        $region27: #{tpu_custom_call.1} parent=23 // pred_region
          %146 = dma.done %s139, 128
        $region28: #{tpu_custom_call.1} parent=23 // pred_fallthru
          _
        %s147 = sand.u32 %s28, 1
        %s148 = scalar_lea.sflag [#allocation3], %s147
        %s149 = sand.u32 %s28, 1
        %s150 = smul.addr %s149, 8
        %s151 = scalar_lea.vmem [#allocation2], %s150
        %p152 = pneg %p41
        %p153 = pneg %p38
        %p154 = pneg %p67
        %p155 = pneg %p64
        %p156 = scmp.lt.s32.totalorder %s20, 1
        %s157 = scalar_select %p156, %s20, 1
        %s158 = smul.addr %s157, 4
        %s159 = scalar_lea.vmem %s1, %s158
        %p160 = pneg %p93
        %p161 = pneg %p90
        %s162 = sand.u32 %s80, 1
        %s163 = scalar_lea.sflag [#allocation4], %s162
        %s164 = sand.u32 %s80, 1
        %s165 = smul.addr %s164, 24
        %s166 = scalar_lea.vmem [#allocation5], %s165
        %p167 = scmp.lt.s32.totalorder %s20, 1
        %s168 = scalar_select %p167, %s20, 1
        %s169 = smul.addr %s168, 4
        %s170 = scalar_lea.vmem %s1, %s169
        %v172 = vld [vmem:[%s142] sm:$0xff]
        %v174 = vcombine.high %v172, %v172
        %vm176 = vcmask 1043456
        %v177 = vsel %vm176, %v172, 0.0
        %v178 = vsel %vm176, %v174, 0.0
        %v179 = vadd.f32 %v177, %v178
        %180 = vadd.xlane.f32.xlu0 %v179
        %v181 = vpop.xlane.xlu0 %180
        %v182 = vmul.f32 %v181, 0.00390625
        %vm183 = vcmask 3072
        %184 = vst.msk [vmem:[%s170] sm:$0xf] %vm183, %v182
        %185 = vst [vmem:[%s166] sm:$0xff] 0
        %186 = vst [vmem:[%s166 + $0x8] sm:$0xf] 0
        %187 = vst [vmem:[%s166 + $0xc] sm:$0xff] 0
        %188 = vst [vmem:[%s166 + $0x14] sm:$0xf] 0
        %v189 = vpack.c.bf16 %v172, %v172
        %v190 = vpack.c.bf16 %v174, %v174
        %v193 = vunpack.c.l.b16 %v189
        %v194 = vunpack.c.l.b16 %v190
        %v195 = vpack.c.b16 %v194, %v193
        %197 = vst [vmem:[%s166] sm:$0x33] %v195
        %p198 = scmp.lt.s32.totalorder %s20, 1
        %s199 = scalar_select %p198, %s20, 1
        %s200 = smul.addr %s199, 4
        %s201 = scalar_lea.vmem %s1, %s200
        %s202 = sand.u32 %s80, 1
        %s203 = scalar_lea.sflag [#allocation4], %s202
        %s204 = sand.u32 %s80, 1
        %s205 = smul.addr %s204, 24
        %s206 = scalar_lea.vmem [#allocation5], %s205
        // Predicated region
        $region29: #{tpu_custom_call.1} parent=23 // pred_check
          %p207 = pneg %p64
        $region30: #{tpu_custom_call.1} parent=23 // pred_check_branch
          %209 = sbr.rel (%p207) target = $region32
        $region31: #{tpu_custom_call.1} parent=23 // pred_region
          _
        $region32: #{tpu_custom_call.1} parent=23 // pred_fallthru
          _
        // Predicated region
        $region33: #{tpu_custom_call.1} parent=23 // pred_check
          %p210 = pneg %p90
        $region34: #{tpu_custom_call.1} parent=23 // pred_check_branch
          %212 = sbr.rel (%p210) target = $region36
        $region35: #{tpu_custom_call.1} parent=23 // pred_region
          %s214 = ssub.s32 384, 384
          %215 = vsyncadd %s203, %s214
          %s216 = smul.addr %s20, 6
          %s217 = smul.addr %s216, 64
          %s218 = scalar_lea.hbm %s2, %s217
          %s219 = sshll.u32 %s206, 4
          %s220 = int_to_ptr.vmem [resolvable:$true] %s219
          %225 = dma.vmem_to_hbm [thread:$0]  %s220, 384, %s218, %s203, 192, 192, 12
        $region36: #{tpu_custom_call.1} parent=23 // pred_fallthru
          _
      $region24: #{tpu_custom_call.1} parent=5 // pred_fallthru
        _
      %p226 = scmp.le.s32.totalorder 2, %s15
      // Predicated region
      $region37: #{tpu_custom_call.1} parent=5 // pred_check
        %p227 = pneg %p226
      $region38: #{tpu_custom_call.1} parent=5 // pred_check_branch
        %229 = sbr.rel (%p227) target = $region40
      $region39: #{tpu_custom_call.1} parent=5 // pred_region
        %s230 = ssub.s32 %s15, 2
        // Predicated region
        $region41: #{tpu_custom_call.1} parent=39 // pred_check
          %p231 = pneg %p70
        $region42: #{tpu_custom_call.1} parent=39 // pred_check_branch
          %233 = sbr.rel (%p231) target = $region44
        $region43: #{tpu_custom_call.1} parent=39 // pred_region
          %p234 = scmp.lt.s32.totalorder %s21, 1
          %s235 = scalar_select %p234, %s21, 1
          %s236 = smul.addr %s235, 4
          %s237 = scalar_lea.vmem %s1, %s236
        $region44: #{tpu_custom_call.1} parent=39 // pred_fallthru
          _
        // Predicated region
        $region45: #{tpu_custom_call.1} parent=39 // pred_check
          %p238 = pneg %p96
        $region46: #{tpu_custom_call.1} parent=39 // pred_check_branch
          %240 = sbr.rel (%p238) target = $region48
        $region47: #{tpu_custom_call.1} parent=39 // pred_region
          %s241 = sand.u32 %s81, 1
          %s242 = scalar_lea.sflag [#allocation4], %s241
          %s243 = sand.u32 %s81, 1
          %s244 = smul.addr %s243, 24
          %s245 = scalar_lea.vmem [#allocation5], %s244
          %246 = dma.done %s242, 384
        $region48: #{tpu_custom_call.1} parent=39 // pred_fallthru
          _
      $region40: #{tpu_custom_call.1} parent=5 // pred_fallthru
        _
    $region6: #{tpu_custom_call.1} parent=1 // loop_footer
      %s19 = sadd.s32 1, %s15
    $region7: #{tpu_custom_call.1} parent=1 // loop_footer_branch
      %14 = sbr.rel target = $region3
    $region8: #{tpu_custom_call.1} parent=1 // loop_exit
      _
    %247 = vsyncpa [#allocation3], 1
    %s248 = scalar_lea.sflag [#allocation3], 1
    %249 = vsyncpa %s248, 1
    %250 = vsyncpa [#allocation4], 1
    %s251 = scalar_lea.sflag [#allocation4], 1
    %252 = vsyncpa %s251, 1

</llo_original>
